<compile_context>
chip_gen: v5e
topology: v5e:2x2
jax: 0.10.0
libtpu: 0.0.40
codegen_flags: <defaults>
</compile_context>

<pallas_src>
import functools
import math

import jax
import jax.numpy as jnp
from jax.experimental import pallas as pl
from jax.experimental.pallas import tpu as pltpu


def _round_up(x: int, m: int) -> int:
    return ((x + m - 1) // m) * m


def _pick_tile(n: int, pref: int = 128) -> int:
    """Largest tile in {pref,64,32,16,8} that divides n, else n itself."""
    for t in (pref, 64, 32, 16, 8):
        if t <= n and n % t == 0:
            return t
    return n


def _pick_batch_block(batch: int, tq: int, target_rows: int = 512) -> int:
    """Largest divisor of `batch` such that batch_block * tq <= target_rows."""
    for cand in range(batch, 0, -1):
        if batch % cand == 0 and cand * tq <= target_rows:
            return cand
    return 1


def _head_attention_kernel(scale, mxu_dtype,
                           q_in_ref, k_in_ref, v_in_ref,
                           wq_ref, bq_ref, wk_ref, bk_ref, wv_ref, bv_ref,
                           o_ref, q_sc, m_sc, l_sc, acc_sc):
    """grid = (batch_block, q_tile, kv_tile); kv_tile is the reduction axis."""
    ki = pl.program_id(2)
    bb, tq, d_in = q_in_ref.shape
    _, tk, _ = k_in_ref.shape
    d_kp = wq_ref.shape[1]

    @pl.when(ki == 0)
    def _init():
        # Q projection once per (batch-block, q-tile); scale folded into q.
        xq = q_in_ref[...].reshape(bb * tq, d_in)
        q = jnp.dot(xq, wq_ref[...],
                    preferred_element_type=jnp.float32) + bq_ref[...]
        q_sc[...] = (q * scale).reshape(bb, tq, d_kp)
        m_sc[...] = jnp.full(m_sc.shape, -jnp.inf, jnp.float32)
        l_sc[...] = jnp.zeros(l_sc.shape, jnp.float32)
        acc_sc[...] = jnp.zeros(acc_sc.shape, jnp.float32)

    # K / V projections for this kv tile: one big (bb*tk, Din) matmul each.
    xk = k_in_ref[...].reshape(bb * tk, d_in)
    k = (jnp.dot(xk, wk_ref[...], preferred_element_type=jnp.float32)
         + bk_ref[...]).reshape(bb, tk, d_kp)
    xv = v_in_ref[...].reshape(bb * tk, d_in)
    v = (jnp.dot(xv, wv_ref[...], preferred_element_type=jnp.float32)
         + bv_ref[...]).reshape(bb, tk, wv_ref.shape[1])

    # Scores: contract last dims directly (no explicit transpose of k).
    s = jnp.einsum("bqd,bkd->bqk",
                   q_sc[...].astype(mxu_dtype), k.astype(mxu_dtype),
                   preferred_element_type=jnp.float32)

    # Online (flash) softmax update.
    m_prev = m_sc[...]
    m_new = jnp.maximum(m_prev, s.max(axis=-1, keepdims=True))
    alpha = jnp.exp(m_prev - m_new)
    p = jnp.exp(s - m_new)
    l_sc[...] = alpha * l_sc[...] + p.sum(axis=-1, keepdims=True)
    acc_sc[...] = alpha * acc_sc[...] + jnp.einsum(
        "bqk,bkd->bqd", p.astype(mxu_dtype), v.astype(mxu_dtype),
        preferred_element_type=jnp.float32)
    m_sc[...] = m_new

    @pl.when(ki == pl.num_programs(2) - 1)
    def _finalize():
        inv_l = pl.reciprocal(l_sc[...], approx=True)
        o_ref[...] = (acc_sc[...] * inv_l).astype(o_ref.dtype)


@jax.jit
def head_attention(query, key, value, wq, bq, wk, bk, wv, bv):
    """query/key/value: [B, S, Din]; w*: [Din, Dout]; b*: [1, Dout]."""
    B, S, Din = query.shape
    Dk = wq.shape[1]
    Dv = wv.shape[1]
    dtype = query.dtype

    # Pad projection output dims to the 128-lane width so the MXU N dim and
    # the output stores are lane-dense; zero padding leaves results unchanged.
    Dkp = max(_round_up(Dk, 128), 128)
    Dvp = max(_round_up(Dv, 128), 128)

    def pad_cols(a, n):
        return jnp.pad(a, ((0, 0), (0, n - a.shape[1])))

    wq_p, bq_p = pad_cols(wq, Dkp), pad_cols(bq, Dkp)
    wk_p, bk_p = pad_cols(wk, Dkp), pad_cols(bk, Dkp)
    wv_p, bv_p = pad_cols(wv, Dvp), pad_cols(bv, Dvp)

    tq = _pick_tile(S)
    tk = _pick_tile(S)
    Bb = _pick_batch_block(B, tq)
    grid = (B // Bb, S // tq, S // tk)

    scale = 1.0 / math.sqrt(Dk)              # uses the *unpadded* dim_k
    mxu_dtype = jnp.bfloat16 if dtype == jnp.bfloat16 else jnp.float32
    kernel = functools.partial(_head_attention_kernel, scale, mxu_dtype)

    # --- BlockSpecs -------------------------------------------------------
    q_spec = pl.BlockSpec((Bb, tq, Din), lambda b, qi, ki: (b, qi, 0))
    kv_spec = pl.BlockSpec((Bb, tk, Din), lambda b, qi, ki: (b, ki, 0))

    def w_spec(n):
        return pl.BlockSpec((Din, n), lambda b, qi, ki: (0, 0))

    def b_spec(n):
        return pl.BlockSpec((1, n), lambda b, qi, ki: (0, 0))

    out_spec = pl.BlockSpec((Bb, tq, Dvp), lambda b, qi, ki: (b, qi, 0))

    # --- VMEM budget & cost hint -------------------------------------------
    isz = query.dtype.itemsize
    act_bytes = (Bb * tq * Din + 2 * Bb * tk * Din) * isz
    w_bytes = (Din * (2 * Dkp + Dvp) + (2 * Dkp + Dvp)) * isz
    out_bytes = Bb * tq * Dvp * isz
    scratch_bytes = Bb * tq * (Dkp + Dvp + 2) * 4
    est = 2 * (act_bytes + w_bytes + out_bytes) + scratch_bytes
    vmem_limit = int(min(max(4 * est, 32 * 2**20), 64 * 2**20))

    proj_flops = 2 * B * S * Din * (2 * Dkp + Dvp) * (S // tq)
    attn_flops = 2 * B * S * S * (Dkp + Dvp)
    cost = pl.CostEstimate(
        flops=int(proj_flops + attn_flops),
        transcendentals=int(B * S * S),
        bytes_accessed=int((3 * B * S * Din + B * S * Dvp) * isz
                           + (Din + 1) * (2 * Dkp + Dvp) * isz),
    )

    out = pl.pallas_call(
        kernel,
        out_shape=jax.ShapeDtypeStruct((B, S, Dvp), dtype),
        grid_spec=pltpu.PrefetchScalarGridSpec(
            num_scalar_prefetch=0,
            grid=grid,
            in_specs=[q_spec, kv_spec, kv_spec,
                      w_spec(Dkp), b_spec(Dkp),
                      w_spec(Dkp), b_spec(Dkp),
                      w_spec(Dvp), b_spec(Dvp)],
            out_specs=out_spec,
            scratch_shapes=[
                pltpu.VMEM((Bb, tq, Dkp), jnp.float32),   # projected+scaled q
                pltpu.VMEM((Bb, tq, 1), jnp.float32),     # running max m
                pltpu.VMEM((Bb, tq, 1), jnp.float32),     # running denom l
                pltpu.VMEM((Bb, tq, Dvp), jnp.float32),   # output accumulator
            ],
        ),
        compiler_params=pltpu.CompilerParams(
            dimension_semantics=("parallel", "parallel", "arbitrary"),
            vmem_limit_bytes=vmem_limit,
        ),
        cost_estimate=cost,
    )(query, key, value, wq_p, bq_p, wk_p, bk_p, wv_p, bv_p)

    # Drop the lane padding on the value/output feature dim.
    return out[..., :Dv]


def init_params(key, dim_in, dim_k, dim_v, dtype=jnp.float32):
    """Init mimicking torch.nn.Linear (uniform +/- 1/sqrt(fan_in)).

    Weights returned already transposed to [Din, Dout]; biases as [1, Dout].
    """
    keys = jax.random.split(key, 6)
    bound = 1.0 / (dim_in ** 0.5)

    def u(k, shape):
        return jax.random.uniform(k, shape, dtype, minval=-bound, maxval=bound)

    wq = u(keys[0], (dim_in, dim_k))
    bq = u(keys[1], (1, dim_k))
    wk = u(keys[2], (dim_in, dim_k))
    bk = u(keys[3], (1, dim_k))
    wv = u(keys[4], (dim_in, dim_v))
    bv = u(keys[5], (1, dim_v))
    return wq, bq, wk, bk, wv, bv


def reference(query, key, value, wq, bq, wk, bk, wv, bv):
    """Pure-JAX reference mirroring the PyTorch forward."""
    q = query @ wq + bq
    k = key @ wk + bk
    v = value @ wv + bv
    scores = jnp.einsum("bqd,bkd->bqk", q, k) / (q.shape[-1] ** 0.5)
    p = jax.nn.softmax(scores, axis=-1)
    return jnp.einsum("bqk,bkd->bqd", p, v)


if __name__ == "__main__":
    B, S, dim_in, dim_k, dim_v = 2, 8, 32, 32, 32

    root = jax.random.PRNGKey(0)
    kq, kk, kv, kp = jax.random.split(root, 4)
    query = jax.random.normal(kq, (B, S, dim_in), jnp.float32)
    key_x = jax.random.normal(kk, (B, S, dim_in), jnp.float32)
    value = jax.random.normal(kv, (B, S, dim_in), jnp.float32)

    params = init_params(kp, dim_in, dim_k, dim_v)

    out = head_attention(query, key_x, value, *params)
    out = jax.block_until_ready(out)

    ref = reference(query, key_x, value, *params)
    assert out.shape == (B, S, dim_v)
    max_err = float(jnp.max(jnp.abs(out - ref)))
    # Tolerance loosened slightly vs 1e-5 because of approx reciprocal (EUP vrcp).
    assert jnp.allclose(out, ref, atol=5e-3, rtol=5e-3), (
        f"mismatch vs reference (max_err={max_err})")

    print("KERNEL_OK")
</pallas_src>

<mosaic_0001>
module attributes {stable_mosaic.version = 11 : i64} {
  func.func @_head_attention_kernel(%arg0: i32, %arg1: i32, %arg2: i32, %arg3: memref<2x8x32xf32, #tpu.memory_space<vmem>>, %arg4: memref<2x8x32xf32, #tpu.memory_space<vmem>>, %arg5: memref<2x8x32xf32, #tpu.memory_space<vmem>>, %arg6: memref<32x128xf32, #tpu.memory_space<vmem>>, %arg7: memref<1x128xf32, #tpu.memory_space<vmem>>, %arg8: memref<32x128xf32, #tpu.memory_space<vmem>>, %arg9: memref<1x128xf32, #tpu.memory_space<vmem>>, %arg10: memref<32x128xf32, #tpu.memory_space<vmem>>, %arg11: memref<1x128xf32, #tpu.memory_space<vmem>>, %arg12: memref<2x8x128xf32, #tpu.memory_space<vmem>>, %arg13: memref<2x8x128xf32, #tpu.memory_space<vmem>>, %arg14: memref<2x8x1xf32, #tpu.memory_space<vmem>>, %arg15: memref<2x8x1xf32, #tpu.memory_space<vmem>>, %arg16: memref<2x8x128xf32, #tpu.memory_space<vmem>>) attributes {dimension_semantics = [#tpu.dimension_semantics<parallel>, #tpu.dimension_semantics<parallel>, #tpu.dimension_semantics<arbitrary>], iteration_bounds = array<i64: 1, 1, 1>, scalar_prefetch = 0 : i64, scratch_operands = 4 : i64, tpu.core_type = #tpu.core_type<tc>, window_params = [{transform_indices = @transform_0, window_bounds = array<i64: 2, 8, 32>}, {transform_indices = @transform_1, window_bounds = array<i64: 2, 8, 32>}, {transform_indices = @transform_2, window_bounds = array<i64: 2, 8, 32>}, {pipeline_mode = #tpu.pipeline_mode<synchronous>, transform_indices = @transform_3, window_bounds = array<i64: 32, 128>}, {pipeline_mode = #tpu.pipeline_mode<synchronous>, transform_indices = @transform_4, window_bounds = array<i64: 1, 128>}, {pipeline_mode = #tpu.pipeline_mode<synchronous>, transform_indices = @transform_5, window_bounds = array<i64: 32, 128>}, {pipeline_mode = #tpu.pipeline_mode<synchronous>, transform_indices = @transform_6, window_bounds = array<i64: 1, 128>}, {pipeline_mode = #tpu.pipeline_mode<synchronous>, transform_indices = @transform_7, window_bounds = array<i64: 32, 128>}, {pipeline_mode = #tpu.pipeline_mode<synchronous>, transform_indices = @transform_8, window_bounds = array<i64: 1, 128>}, {transform_indices = @transform_9, window_bounds = array<i64: 2, 8, 128>}]} {
    %c0_i32 = arith.constant 0 : i32
    %0 = arith.cmpi eq, %arg2, %c0_i32 : i32
    %1 = arith.extui %0 : i1 to i32
    %c0_i32_0 = arith.constant 0 : i32
    %2 = arith.cmpi ne, %1, %c0_i32_0 : i32
    scf.if %2 {
      %c0_42 = arith.constant 0 : index
      %c0_43 = arith.constant 0 : index
      %c0_44 = arith.constant 0 : index
      %46 = vector.load %arg3[%c0_42, %c0_43, %c0_44] : memref<2x8x32xf32, #tpu.memory_space<vmem>>, vector<2x8x32xf32>
      %47 = vector.shape_cast %46 : vector<2x8x32xf32> to vector<16x32xf32>
      %c0_45 = arith.constant 0 : index
      %c0_46 = arith.constant 0 : index
      %48 = vector.load %arg6[%c0_45, %c0_46] : memref<32x128xf32, #tpu.memory_space<vmem>>, vector<32x128xf32>
      %cst_47 = arith.constant dense<0.000000e+00> : vector<16x128xf32>
      %49 = tpu.matmul %47, %48, %cst_47 {dimension_numbers = #tpu.dot_dimension_numbers<[1], [0], [0], [1], [0, 0, 1, 1], [], []>} : vector<16x32xf32>, vector<32x128xf32>, vector<16x128xf32> -> vector<16x128xf32>
      %c0_48 = arith.constant 0 : index
      %c0_49 = arith.constant 0 : index
      %50 = vector.load %arg7[%c0_48, %c0_49] : memref<1x128xf32, #tpu.memory_space<vmem>>, vector<1x128xf32>
      %51 = vector.broadcast %50 : vector<1x128xf32> to vector<16x128xf32>
      %52 = arith.addf %49, %51 : vector<16x128xf32>
      %cst_50 = arith.constant 0.176776692 : f32
      %53 = vector.broadcast %cst_50 : f32 to vector<16x128xf32>
      %54 = arith.mulf %52, %53 : vector<16x128xf32>
      %55 = vector.shape_cast %54 : vector<16x128xf32> to vector<2x8x128xf32>
      %c0_51 = arith.constant 0 : index
      %c0_52 = arith.constant 0 : index
      %c0_53 = arith.constant 0 : index
      %56 = vector.load %arg13[%c0_51, %c0_52, %c0_53] : memref<2x8x128xf32, #tpu.memory_space<vmem>>, vector<2x8x128xf32>
      tpu.vector_store %arg13[%c0_51, %c0_52, %c0_53], %55 {strides = array<i32>} : memref<2x8x128xf32, #tpu.memory_space<vmem>>, vector<2x8x128xf32>,
      %cst_54 = arith.constant 0xFF800000 : f32
      %57 = vector.broadcast %cst_54 : f32 to vector<2x8x1xf32>
      %c0_55 = arith.constant 0 : index
      %c0_56 = arith.constant 0 : index
      %c0_57 = arith.constant 0 : index
      %58 = vector.load %arg14[%c0_55, %c0_56, %c0_57] : memref<2x8x1xf32, #tpu.memory_space<vmem>>, vector<2x8x1xf32>
      tpu.vector_store %arg14[%c0_55, %c0_56, %c0_57], %57 {strides = array<i32>} : memref<2x8x1xf32, #tpu.memory_space<vmem>>, vector<2x8x1xf32>,
      %cst_58 = arith.constant 0.000000e+00 : f32
      %59 = vector.broadcast %cst_58 : f32 to vector<2x8x1xf32>
      %c0_59 = arith.constant 0 : index
      %c0_60 = arith.constant 0 : index
      %c0_61 = arith.constant 0 : index
      %60 = vector.load %arg15[%c0_59, %c0_60, %c0_61] : memref<2x8x1xf32, #tpu.memory_space<vmem>>, vector<2x8x1xf32>
      tpu.vector_store %arg15[%c0_59, %c0_60, %c0_61], %59 {strides = array<i32>} : memref<2x8x1xf32, #tpu.memory_space<vmem>>, vector<2x8x1xf32>,
      %cst_62 = arith.constant 0.000000e+00 : f32
      %61 = vector.broadcast %cst_62 : f32 to vector<2x8x128xf32>
      %c0_63 = arith.constant 0 : index
      %c0_64 = arith.constant 0 : index
      %c0_65 = arith.constant 0 : index
      %62 = vector.load %arg16[%c0_63, %c0_64, %c0_65] : memref<2x8x128xf32, #tpu.memory_space<vmem>>, vector<2x8x128xf32>
      tpu.vector_store %arg16[%c0_63, %c0_64, %c0_65], %61 {strides = array<i32>} : memref<2x8x128xf32, #tpu.memory_space<vmem>>, vector<2x8x128xf32>,
    } else {
    }
    %c0 = arith.constant 0 : index
    %c0_1 = arith.constant 0 : index
    %c0_2 = arith.constant 0 : index
    %3 = vector.load %arg4[%c0, %c0_1, %c0_2] : memref<2x8x32xf32, #tpu.memory_space<vmem>>, vector<2x8x32xf32>
    %4 = vector.shape_cast %3 : vector<2x8x32xf32> to vector<16x32xf32>
    %c0_3 = arith.constant 0 : index
    %c0_4 = arith.constant 0 : index
    %5 = vector.load %arg8[%c0_3, %c0_4] : memref<32x128xf32, #tpu.memory_space<vmem>>, vector<32x128xf32>
    %cst = arith.constant dense<0.000000e+00> : vector<16x128xf32>
    %6 = tpu.matmul %4, %5, %cst {dimension_numbers = #tpu.dot_dimension_numbers<[1], [0], [0], [1], [0, 0, 1, 1], [], []>} : vector<16x32xf32>, vector<32x128xf32>, vector<16x128xf32> -> vector<16x128xf32>
    %c0_5 = arith.constant 0 : index
    %c0_6 = arith.constant 0 : index
    %7 = vector.load %arg9[%c0_5, %c0_6] : memref<1x128xf32, #tpu.memory_space<vmem>>, vector<1x128xf32>
    %8 = vector.broadcast %7 : vector<1x128xf32> to vector<16x128xf32>
    %9 = arith.addf %6, %8 : vector<16x128xf32>
    %10 = vector.shape_cast %9 : vector<16x128xf32> to vector<2x8x128xf32>
    %c0_7 = arith.constant 0 : index
    %c0_8 = arith.constant 0 : index
    %c0_9 = arith.constant 0 : index
    %11 = vector.load %arg5[%c0_7, %c0_8, %c0_9] : memref<2x8x32xf32, #tpu.memory_space<vmem>>, vector<2x8x32xf32>
    %12 = vector.shape_cast %11 : vector<2x8x32xf32> to vector<16x32xf32>
    %c0_10 = arith.constant 0 : index
    %c0_11 = arith.constant 0 : index
    %13 = vector.load %arg10[%c0_10, %c0_11] : memref<32x128xf32, #tpu.memory_space<vmem>>, vector<32x128xf32>
    %cst_12 = arith.constant dense<0.000000e+00> : vector<16x128xf32>
    %14 = tpu.matmul %12, %13, %cst_12 {dimension_numbers = #tpu.dot_dimension_numbers<[1], [0], [0], [1], [0, 0, 1, 1], [], []>} : vector<16x32xf32>, vector<32x128xf32>, vector<16x128xf32> -> vector<16x128xf32>
    %c0_13 = arith.constant 0 : index
    %c0_14 = arith.constant 0 : index
    %15 = vector.load %arg11[%c0_13, %c0_14] : memref<1x128xf32, #tpu.memory_space<vmem>>, vector<1x128xf32>
    %16 = vector.broadcast %15 : vector<1x128xf32> to vector<16x128xf32>
    %17 = arith.addf %14, %16 : vector<16x128xf32>
    %18 = vector.shape_cast %17 : vector<16x128xf32> to vector<2x8x128xf32>
    %c0_15 = arith.constant 0 : index
    %c0_16 = arith.constant 0 : index
    %c0_17 = arith.constant 0 : index
    %19 = vector.load %arg13[%c0_15, %c0_16, %c0_17] : memref<2x8x128xf32, #tpu.memory_space<vmem>>, vector<2x8x128xf32>
    "tpu.trace_start"() <{level = 10 : i32, message = "bqd,bkd->bqk"}> : () -> ()
    %cst_18 = arith.constant dense<0.000000e+00> : vector<2x8x8xf32>
    %20 = tpu.matmul %19, %10, %cst_18 {dimension_numbers = #tpu.dot_dimension_numbers<[2], [2], [1], [1], [0, 0, 0, 1, 1, 1], [0], [0]>} : vector<2x8x128xf32>, vector<2x8x128xf32>, vector<2x8x8xf32> -> vector<2x8x8xf32>
    "tpu.trace_stop"() : () -> ()
    %c0_19 = arith.constant 0 : index
    %c0_20 = arith.constant 0 : index
    %c0_21 = arith.constant 0 : index
    %21 = vector.load %arg14[%c0_19, %c0_20, %c0_21] : memref<2x8x1xf32, #tpu.memory_space<vmem>>, vector<2x8x1xf32>
    %cst_22 = arith.constant dense<0xFF800000> : vector<2x8xf32>
    %22 = vector.multi_reduction <maximumf>, %20, %cst_22 [2] : vector<2x8x8xf32> to vector<2x8xf32>
    %23 = vector.shape_cast %22 : vector<2x8xf32> to vector<2x8x1xf32>
    %24 = arith.maximumf %21, %23 : vector<2x8x1xf32>
    %25 = arith.subf %21, %24 : vector<2x8x1xf32>
    %26 = math.exp %25 : vector<2x8x1xf32>
    %27 = vector.broadcast %24 : vector<2x8x1xf32> to vector<2x8x8xf32>
    %28 = arith.subf %20, %27 : vector<2x8x8xf32>
    %29 = math.exp %28 : vector<2x8x8xf32>
    %c0_23 = arith.constant 0 : index
    %c0_24 = arith.constant 0 : index
    %c0_25 = arith.constant 0 : index
    %30 = vector.load %arg15[%c0_23, %c0_24, %c0_25] : memref<2x8x1xf32, #tpu.memory_space<vmem>>, vector<2x8x1xf32>
    %31 = arith.mulf %26, %30 : vector<2x8x1xf32>
    %cst_26 = arith.constant dense<0.000000e+00> : vector<2x8xf32>
    %32 = vector.multi_reduction <add>, %29, %cst_26 [2] : vector<2x8x8xf32> to vector<2x8xf32>
    %33 = vector.shape_cast %32 : vector<2x8xf32> to vector<2x8x1xf32>
    %34 = arith.addf %31, %33 : vector<2x8x1xf32>
    %c0_27 = arith.constant 0 : index
    %c0_28 = arith.constant 0 : index
    %c0_29 = arith.constant 0 : index
    %35 = vector.load %arg15[%c0_27, %c0_28, %c0_29] : memref<2x8x1xf32, #tpu.memory_space<vmem>>, vector<2x8x1xf32>
    tpu.vector_store %arg15[%c0_27, %c0_28, %c0_29], %34 {strides = array<i32>} : memref<2x8x1xf32, #tpu.memory_space<vmem>>, vector<2x8x1xf32>,
    %c0_30 = arith.constant 0 : index
    %c0_31 = arith.constant 0 : index
    %c0_32 = arith.constant 0 : index
    %36 = vector.load %arg16[%c0_30, %c0_31, %c0_32] : memref<2x8x128xf32, #tpu.memory_space<vmem>>, vector<2x8x128xf32>
    %37 = vector.broadcast %26 : vector<2x8x1xf32> to vector<2x8x128xf32>
    %38 = arith.mulf %37, %36 : vector<2x8x128xf32>
    "tpu.trace_start"() <{level = 10 : i32, message = "bqk,bkd->bqd"}> : () -> ()
    %cst_33 = arith.constant dense<0.000000e+00> : vector<2x8x128xf32>
    %39 = tpu.matmul %29, %18, %cst_33 {dimension_numbers = #tpu.dot_dimension_numbers<[2], [1], [1], [2], [0, 0, 0, 1, 1, 2], [0], [0]>} : vector<2x8x8xf32>, vector<2x8x128xf32>, vector<2x8x128xf32> -> vector<2x8x128xf32>
    "tpu.trace_stop"() : () -> ()
    %40 = arith.addf %38, %39 : vector<2x8x128xf32>
    %c0_34 = arith.constant 0 : index
    %c0_35 = arith.constant 0 : index
    %c0_36 = arith.constant 0 : index
    %41 = vector.load %arg16[%c0_34, %c0_35, %c0_36] : memref<2x8x128xf32, #tpu.memory_space<vmem>>, vector<2x8x128xf32>
    tpu.vector_store %arg16[%c0_34, %c0_35, %c0_36], %40 {strides = array<i32>} : memref<2x8x128xf32, #tpu.memory_space<vmem>>, vector<2x8x128xf32>,
    %c0_37 = arith.constant 0 : index
    %c0_38 = arith.constant 0 : index
    %c0_39 = arith.constant 0 : index
    %42 = vector.load %arg14[%c0_37, %c0_38, %c0_39] : memref<2x8x1xf32, #tpu.memory_space<vmem>>, vector<2x8x1xf32>
    tpu.vector_store %arg14[%c0_37, %c0_38, %c0_39], %24 {strides = array<i32>} : memref<2x8x1xf32, #tpu.memory_space<vmem>>, vector<2x8x1xf32>,
    %c0_i32_40 = arith.constant 0 : i32
    %43 = arith.cmpi eq, %arg2, %c0_i32_40 : i32
    %44 = arith.extui %43 : i1 to i32
    %c0_i32_41 = arith.constant 0 : i32
    %45 = arith.cmpi ne, %44, %c0_i32_41 : i32
    scf.if %45 {
      %c0_42 = arith.constant 0 : index
      %c0_43 = arith.constant 0 : index
      %c0_44 = arith.constant 0 : index
      %46 = vector.load %arg15[%c0_42, %c0_43, %c0_44] : memref<2x8x1xf32, #tpu.memory_space<vmem>>, vector<2x8x1xf32>
      %47 = tpu.reciprocal %46 {approx = true} : vector<2x8x1xf32> -> vector<2x8x1xf32>
      %c0_45 = arith.constant 0 : index
      %c0_46 = arith.constant 0 : index
      %c0_47 = arith.constant 0 : index
      %48 = vector.load %arg16[%c0_45, %c0_46, %c0_47] : memref<2x8x128xf32, #tpu.memory_space<vmem>>, vector<2x8x128xf32>
      %49 = vector.broadcast %47 : vector<2x8x1xf32> to vector<2x8x128xf32>
      %50 = arith.mulf %48, %49 : vector<2x8x128xf32>
      %c0_48 = arith.constant 0 : index
      %c0_49 = arith.constant 0 : index
      %c0_50 = arith.constant 0 : index
      %51 = vector.load %arg12[%c0_48, %c0_49, %c0_50] : memref<2x8x128xf32, #tpu.memory_space<vmem>>, vector<2x8x128xf32>
      tpu.vector_store %arg12[%c0_48, %c0_49, %c0_50], %50 {strides = array<i32>} : memref<2x8x128xf32, #tpu.memory_space<vmem>>, vector<2x8x128xf32>,
    } else {
    }
    return
  }
  func.func @transform_0(%arg0: i32, %arg1: i32, %arg2: i32) -> (i32, i32, i32) {
    %c0_i32 = arith.constant 0 : i32
    %c0_i32_0 = arith.constant 0 : i32
    return %arg0, %arg1, %c0_i32 : i32, i32, i32
  }
  func.func @transform_1(%arg0: i32, %arg1: i32, %arg2: i32) -> (i32, i32, i32) {
    %c0_i32 = arith.constant 0 : i32
    %c0_i32_0 = arith.constant 0 : i32
    return %arg0, %arg2, %c0_i32 : i32, i32, i32
  }
  func.func @transform_2(%arg0: i32, %arg1: i32, %arg2: i32) -> (i32, i32, i32) {
    %c0_i32 = arith.constant 0 : i32
    %c0_i32_0 = arith.constant 0 : i32
    return %arg0, %arg2, %c0_i32 : i32, i32, i32
  }
  func.func @transform_3(%arg0: i32, %arg1: i32, %arg2: i32) -> (i32, i32) {
    %c0_i32 = arith.constant 0 : i32
    %c0_i32_0 = arith.constant 0 : i32
    %c0_i32_1 = arith.constant 0 : i32
    return %c0_i32, %c0_i32_0 : i32, i32
  }
  func.func @transform_4(%arg0: i32, %arg1: i32, %arg2: i32) -> (i32, i32) {
    %c0_i32 = arith.constant 0 : i32
    %c0_i32_0 = arith.constant 0 : i32
    %c0_i32_1 = arith.constant 0 : i32
    return %c0_i32, %c0_i32_0 : i32, i32
  }
  func.func @transform_5(%arg0: i32, %arg1: i32, %arg2: i32) -> (i32, i32) {
    %c0_i32 = arith.constant 0 : i32
    %c0_i32_0 = arith.constant 0 : i32
    %c0_i32_1 = arith.constant 0 : i32
    return %c0_i32, %c0_i32_0 : i32, i32
  }
  func.func @transform_6(%arg0: i32, %arg1: i32, %arg2: i32) -> (i32, i32) {
    %c0_i32 = arith.constant 0 : i32
    %c0_i32_0 = arith.constant 0 : i32
    %c0_i32_1 = arith.constant 0 : i32
    return %c0_i32, %c0_i32_0 : i32, i32
  }
  func.func @transform_7(%arg0: i32, %arg1: i32, %arg2: i32) -> (i32, i32) {
    %c0_i32 = arith.constant 0 : i32
    %c0_i32_0 = arith.constant 0 : i32
    %c0_i32_1 = arith.constant 0 : i32
    return %c0_i32, %c0_i32_0 : i32, i32
  }
  func.func @transform_8(%arg0: i32, %arg1: i32, %arg2: i32) -> (i32, i32) {
    %c0_i32 = arith.constant 0 : i32
    %c0_i32_0 = arith.constant 0 : i32
    %c0_i32_1 = arith.constant 0 : i32
    return %c0_i32, %c0_i32_0 : i32, i32
  }
  func.func @transform_9(%arg0: i32, %arg1: i32, %arg2: i32) -> (i32, i32, i32) {
    %c0_i32 = arith.constant 0 : i32
    %c0_i32_0 = arith.constant 0 : i32
    return %arg0, %arg1, %c0_i32 : i32, i32, i32
  }
}

</mosaic_0001>

<llo_original>
// kernel: head_attention.1
$region0: #{head_attention.1}
  #allocation0 [shape = 'u32[]', space=smem, size = 0x4, offset = 0x4, fixed_abs, tag = 'smem constant byte address 0x4 - core index']
  #allocation1 [shape = 'u32[72,128]{1,0:T(1,128)}', space=vmem, size = 0x9000, scoped, tag = 'internal scratch']
  #allocation2 [shape = 'f32[2,8,128]{2,1,0:T(8,128)}', space=vmem, size = 0x2000, scoped, tag = 'scratch operand']
  #allocation3 [shape = 'f32[2,8,1]{2,1,0:T(8,128)}', space=vmem, size = 0x2000, scoped, tag = 'scratch operand']
  #allocation4 [shape = 'f32[2,8,1]{2,1,0:T(8,128)}', space=vmem, size = 0x2000, scoped, tag = 'scratch operand']
  #allocation5 [shape = 'f32[2,8,128]{2,1,0:T(8,128)}', space=vmem, size = 0x2000, scoped, tag = 'scratch operand']
  %s0 = inlined_call_operand.vmem [shape: f32[2,8,32], index: 0, kind: input, shape index: {}]
  %s1 = inlined_call_operand.vmem [shape: f32[2,8,32], index: 1, kind: input, shape index: {}]
  %s2 = inlined_call_operand.vmem [shape: f32[2,8,32], index: 2, kind: input, shape index: {}]
  %s3 = inlined_call_operand.vmem [shape: f32[32,128], index: 3, kind: input, shape index: {}]
  %s4 = inlined_call_operand.vmem [shape: f32[1,128], index: 4, kind: input, shape index: {}]
  %s5 = inlined_call_operand.vmem [shape: f32[32,128], index: 5, kind: input, shape index: {}]
  %s6 = inlined_call_operand.vmem [shape: f32[1,128], index: 6, kind: input, shape index: {}]
  %s7 = inlined_call_operand.vmem [shape: f32[32,128], index: 7, kind: input, shape index: {}]
  %s8 = inlined_call_operand.vmem [shape: f32[1,128], index: 8, kind: input, shape index: {}]
  %s9 = inlined_call_operand.hbm [shape: f32[2,8,128], index: 9, kind: output, shape index: {}]
  %s10 = sld [smem:[#allocation0]]
  $region54: #{head_attention.1} parent=0
    _
  %s12 = ssub.s32 1, %s10
  %s13 = scalar_select 0, %s12, %s10
  $region1: #{head_attention.1} parent=0
    #allocation6 [shape = 'u8[8192]{0}', space=vmem, size = 0x2000, scoped, tag = 'output window, operand 0, single buffered']
    #allocation7 [shape = 's32[1]{0}', space=sflag, size = 0x4, scoped, tag = 'scoped memory for head_attention.1']
    %14 = vsyncpa [#allocation7], 0
    // Predicated region
    $region2: #{head_attention.1} parent=1 // pred_check
      _
    $region3: #{head_attention.1} parent=1 // pred_check_branch
      %16 = sbr.rel (0) target = $region5
    $region4: #{head_attention.1} parent=1 // pred_region
      _
    $region5: #{head_attention.1} parent=1 // pred_fallthru
      _
    // Predicated region
    $region6: #{head_attention.1} parent=1 // pred_check
      _
    $region7: #{head_attention.1} parent=1 // pred_check_branch
      %18 = sbr.rel (0) target = $region9
    $region8: #{head_attention.1} parent=1 // pred_region
      _
    $region9: #{head_attention.1} parent=1 // pred_fallthru
      _
    // Predicated region
    $region10: #{head_attention.1} parent=1 // pred_check
      _
    $region11: #{head_attention.1} parent=1 // pred_check_branch
      %20 = sbr.rel (0) target = $region13
    $region12: #{head_attention.1} parent=1 // pred_region
      _
    $region13: #{head_attention.1} parent=1 // pred_fallthru
      _
    // Predicated region
    $region14: #{head_attention.1} parent=1 // pred_check
      _
    $region15: #{head_attention.1} parent=1 // pred_check_branch
      %22 = sbr.rel (0) target = $region17
    $region16: #{head_attention.1} parent=1 // pred_region
      _
    $region17: #{head_attention.1} parent=1 // pred_fallthru
      _
    // Predicated region
    $region18: #{head_attention.1} parent=1 // pred_check
      _
    $region19: #{head_attention.1} parent=1 // pred_check_branch
      %24 = sbr.rel (0) target = $region21
    $region20: #{head_attention.1} parent=1 // pred_region
      _
    $region21: #{head_attention.1} parent=1 // pred_fallthru
      _
    // Predicated region
    $region22: #{head_attention.1} parent=1 // pred_check
      _
    $region23: #{head_attention.1} parent=1 // pred_check_branch
      %26 = sbr.rel (0) target = $region25
    $region24: #{head_attention.1} parent=1 // pred_region
      _
    $region25: #{head_attention.1} parent=1 // pred_fallthru
      _
    // Predicated region
    $region26: #{head_attention.1} parent=1 // pred_check
      _
    $region27: #{head_attention.1} parent=1 // pred_check_branch
      %28 = sbr.rel (0) target = $region29
    $region28: #{head_attention.1} parent=1 // pred_region
      _
    $region29: #{head_attention.1} parent=1 // pred_fallthru
      _
    // Predicated region
    $region30: #{head_attention.1} parent=1 // pred_check
      _
    $region31: #{head_attention.1} parent=1 // pred_check_branch
      %30 = sbr.rel (0) target = $region33
    $region32: #{head_attention.1} parent=1 // pred_region
      _
    $region33: #{head_attention.1} parent=1 // pred_fallthru
      _
    // Predicated region
    $region34: #{head_attention.1} parent=1 // pred_check
      _
    $region35: #{head_attention.1} parent=1 // pred_check_branch
      %32 = sbr.rel (0) target = $region37
    $region36: #{head_attention.1} parent=1 // pred_region
      _
    $region37: #{head_attention.1} parent=1 // pred_fallthru
      _
    %p33 = scmp.eq.s32.totalorder 0, 0
    // Predicated region
    $region38: #{head_attention.1} parent=1 // pred_check
      %p34 = pneg %p33
    $region39: #{head_attention.1} parent=1 // pred_check_branch
      %36 = sbr.rel (%p34) target = $region41
    $region40: #{head_attention.1} parent=1 // pred_region
      %v37 = vld [vmem:[%s0] sm:$0xff]
      %v38 = vld [vmem:[%s0 + $0x8] sm:$0xff]
      %v39 = vld [vmem:[%s3] sm:$0xff]
      %v40 = vld [vmem:[%s3 + $0x8] sm:$0xff]
      %v41 = vld [vmem:[%s3 + $0x10] sm:$0xff]
      %v42 = vld [vmem:[%s3 + $0x18] sm:$0xff]
      %v43 = vld [vmem:[%s4] sm:$0x1]
      %v45 = vperm.slane %v43, 0
      %vm47 = vcmask 261120
      %v49 = vsel %vm47, %v37, 0
      %v52 = vsel %vm47, %v38, 0
      %54 = vmatpush.msra.mxu0 0.0
      %55 = vmatpush.msra.mxu0 0.0
      %56 = vmatpush.msra.mxu0 0.0
      %57 = vmatpush.msra.mxu0 0.0
      %58 = vmatpush.msra.mxu0 0.0
      %59 = vmatpush.msra.mxu0 0.0
      %60 = vmatpush.msra.mxu0 0.0
      %61 = vmatpush.msra.mxu0 0.0
      %62 = vmatpush.msra.mxu0 0.0
      %63 = vmatpush.msra.mxu0 0.0
      %64 = vmatpush.msra.mxu0 0.0
      %65 = vmatpush.msra.mxu0 0.0
      %66 = vmatpush.msra.mxu0 %v42
      %67 = vmatpush.msra.mxu0 %v41
      %68 = vmatpush.msra.mxu0 %v40
      %69 = vmatpush.msra.mxu0 %v39
      %70 = vmatmul.f32.gmra.mxu0 %v49
      %v71 = vpop.f32.mrf.mxu0
      %v72 = vadd.f32 %v45, %v71
      %73 = vmatmul.f32.gmra.mxu0 %v52
      %v74 = vpop.f32.mrf.mxu0
      %v75 = vadd.f32 %v45, %v74
      %76 = vdwg.mxu0
      %v77 = vmul.f32 %v72, 0.17677669
      %v78 = vmul.f32 %v75, 0.17677669
      %79 = vst [vmem:[#allocation2] sm:$0xff] %v77
      %80 = vst [vmem:[#allocation2 + $0x8] sm:$0xff] %v78
      %vm81 = vcmask 7168
      %82 = vst.msk [vmem:[#allocation3] sm:$0xff] %vm81, -inf
      %83 = vst.msk [vmem:[#allocation3 + $0x8] sm:$0xff] %vm81, -inf
      %84 = vst.msk [vmem:[#allocation4] sm:$0xff] %vm81, 0.0
      %85 = vst.msk [vmem:[#allocation4 + $0x8] sm:$0xff] %vm81, 0.0
      %86 = vst [vmem:[#allocation5] sm:$0xff] 0.0
      %87 = vst [vmem:[#allocation5 + $0x8] sm:$0xff] 0.0
    $region41: #{head_attention.1} parent=1 // pred_fallthru
      _
    %v88 = vld [vmem:[%s1] sm:$0xff]
    %v89 = vld [vmem:[%s1 + $0x8] sm:$0xff]
    %v90 = vld [vmem:[%s5] sm:$0xff]
    %v91 = vld [vmem:[%s5 + $0x8] sm:$0xff]
    %v92 = vld [vmem:[%s5 + $0x10] sm:$0xff]
    %v93 = vld [vmem:[%s5 + $0x18] sm:$0xff]
    %v94 = vld [vmem:[%s6] sm:$0x1]
    %v96 = vperm.slane %v94, 0
    %vm98 = vcmask 261120
    %v100 = vsel %vm98, %v88, 0
    %v103 = vsel %vm98, %v89, 0
    %105 = vmatpush.msra.mxu0 0.0
    %106 = vmatpush.msra.mxu0 0.0
    %107 = vmatpush.msra.mxu0 0.0
    %108 = vmatpush.msra.mxu0 0.0
    %109 = vmatpush.msra.mxu0 0.0
    %110 = vmatpush.msra.mxu0 0.0
    %111 = vmatpush.msra.mxu0 0.0
    %112 = vmatpush.msra.mxu0 0.0
    %113 = vmatpush.msra.mxu0 0.0
    %114 = vmatpush.msra.mxu0 0.0
    %115 = vmatpush.msra.mxu0 0.0
    %116 = vmatpush.msra.mxu0 0.0
    %117 = vmatpush.msra.mxu0 %v93
    %118 = vmatpush.msra.mxu0 %v92
    %119 = vmatpush.msra.mxu0 %v91
    %120 = vmatpush.msra.mxu0 %v90
    %121 = vmatmul.f32.gmra.mxu0 %v100
    %v122 = vpop.f32.mrf.mxu0
    %v123 = vadd.f32 %v96, %v122
    %124 = vmatmul.f32.gmra.mxu0 %v103
    %v125 = vpop.f32.mrf.mxu0
    %v126 = vadd.f32 %v96, %v125
    %127 = vdwg.mxu0
    %v128 = vld [vmem:[%s2] sm:$0xff]
    %v129 = vld [vmem:[%s2 + $0x8] sm:$0xff]
    %v130 = vld [vmem:[%s7] sm:$0xff]
    %v131 = vld [vmem:[%s7 + $0x8] sm:$0xff]
    %v132 = vld [vmem:[%s7 + $0x10] sm:$0xff]
    %v133 = vld [vmem:[%s7 + $0x18] sm:$0xff]
    %v134 = vld [vmem:[%s8] sm:$0x1]
    %v136 = vperm.slane %v134, 0
    %v139 = vsel %vm98, %v128, 0
    %v142 = vsel %vm98, %v129, 0
    %144 = vmatpush.msra.mxu0 0.0
    %145 = vmatpush.msra.mxu0 0.0
    %146 = vmatpush.msra.mxu0 0.0
    %147 = vmatpush.msra.mxu0 0.0
    %148 = vmatpush.msra.mxu0 0.0
    %149 = vmatpush.msra.mxu0 0.0
    %150 = vmatpush.msra.mxu0 0.0
    %151 = vmatpush.msra.mxu0 0.0
    %152 = vmatpush.msra.mxu0 0.0
    %153 = vmatpush.msra.mxu0 0.0
    %154 = vmatpush.msra.mxu0 0.0
    %155 = vmatpush.msra.mxu0 0.0
    %156 = vmatpush.msra.mxu0 %v133
    %157 = vmatpush.msra.mxu0 %v132
    %158 = vmatpush.msra.mxu0 %v131
    %159 = vmatpush.msra.mxu0 %v130
    %160 = vmatmul.f32.gmra.mxu0 %v139
    %v161 = vpop.f32.mrf.mxu0
    %v162 = vadd.f32 %v136, %v161
    %163 = vmatmul.f32.gmra.mxu0 %v142
    %v164 = vpop.f32.mrf.mxu0
    %v165 = vadd.f32 %v136, %v164
    %166 = vdwg.mxu0
    %v167 = vld [vmem:[#allocation2] sm:$0xff]
    %v168 = vld [vmem:[#allocation2 + $0x8] sm:$0xff]
    %169 = vmatpush.xpose.msra.mxu0 0.0
    %170 = vmatpush.xpose.msra.mxu0 0.0
    %171 = vmatpush.xpose.msra.mxu0 0.0
    %172 = vmatpush.xpose.msra.mxu0 0.0
    %173 = vmatpush.xpose.msra.mxu0 0.0
    %174 = vmatpush.xpose.msra.mxu0 0.0
    %175 = vmatpush.xpose.msra.mxu0 0.0
    %176 = vmatpush.xpose.msra.mxu0 0.0
    %177 = vmatpush.xpose.msra.mxu0 0.0
    %178 = vmatpush.xpose.msra.mxu0 0.0
    %179 = vmatpush.xpose.msra.mxu0 0.0
    %180 = vmatpush.xpose.msra.mxu0 0.0
    %181 = vmatpush.xpose.msra.mxu0 0.0
    %182 = vmatpush.xpose.msra.mxu0 0.0
    %183 = vmatpush.xpose.msra.mxu0 0.0
    %184 = vmatpush.xpose.msra.mxu0 %v123
    %185 = vmatmul.f32.gmra.mxu0 %v167
    %v186 = vpop.f32.mrf.mxu0
    %v187 = vadd.f32 0.0, %v186
    %188 = vdwg.mxu0
    %189 = vmatpush.xpose.msra.mxu0 0.0
    %190 = vmatpush.xpose.msra.mxu0 0.0
    %191 = vmatpush.xpose.msra.mxu0 0.0
    %192 = vmatpush.xpose.msra.mxu0 0.0
    %193 = vmatpush.xpose.msra.mxu0 0.0
    %194 = vmatpush.xpose.msra.mxu0 0.0
    %195 = vmatpush.xpose.msra.mxu0 0.0
    %196 = vmatpush.xpose.msra.mxu0 0.0
    %197 = vmatpush.xpose.msra.mxu0 0.0
    %198 = vmatpush.xpose.msra.mxu0 0.0
    %199 = vmatpush.xpose.msra.mxu0 0.0
    %200 = vmatpush.xpose.msra.mxu0 0.0
    %201 = vmatpush.xpose.msra.mxu0 0.0
    %202 = vmatpush.xpose.msra.mxu0 0.0
    %203 = vmatpush.xpose.msra.mxu0 0.0
    %204 = vmatpush.xpose.msra.mxu0 %v126
    %205 = vmatmul.f32.gmra.mxu0 %v168
    %v206 = vpop.f32.mrf.mxu0
    %v207 = vadd.f32 0.0, %v206
    %208 = vdwg.mxu0
    %v209 = vld [vmem:[#allocation3] sm:$0xff]
    %v210 = vld [vmem:[#allocation3 + $0x8] sm:$0xff]
    %vm211 = vcmask 64512
    %v212 = vsel %vm211, %v187, -inf
    %213 = vmax.xlane.f32.xlu0 %v212
    %v214 = vpop.xlane.xlu0 %213
    %v215 = vsel %vm211, %v207, -inf
    %216 = vmax.xlane.f32.xlu0 %v215
    %v217 = vpop.xlane.xlu0 %216
    %v218 = vmax.f32 %v209, %v214
    %v219 = vmax.f32 %v210, %v217
    %v220 = vsub.f32 %v209, %v218
    %v221 = vsub.f32 %v210, %v219
    %v222 = vmul.f32 %v220, 1.442695
    %v223 = vpow.pop %v222
    %v224 = vmul.f32 %v221, 1.442695
    %v225 = vpow.pop %v224
    %227 = vset.pattern.permute.xlu0 0
    %228 = vperm.xlu0 %227, %v218
    %v229 = vpop.permute.xlu0 %228
    %232 = vset.pattern.permute.xlu0 0
    %233 = vperm.xlu0 %232, %v219
    %v234 = vpop.permute.xlu0 %233
    %v236 = vsub.f32 %v187, %v229
    %v237 = vsub.f32 %v207, %v234
    %v238 = vmul.f32 %v236, 1.442695
    %v239 = vpow.pop %v238
    %v240 = vmul.f32 %v237, 1.442695
    %v241 = vpow.pop %v240
    %v242 = vld [vmem:[#allocation4] sm:$0xff]
    %v243 = vld [vmem:[#allocation4 + $0x8] sm:$0xff]
    %v244 = vmul.f32 %v223, %v242
    %v245 = vmul.f32 %v225, %v243
    %v246 = vsel %vm211, %v239, 0.0
    %247 = vadd.xlane.f32.xlu0 %v246
    %v248 = vpop.xlane.xlu0 %247
    %v249 = vsel %vm211, %v241, 0.0
    %250 = vadd.xlane.f32.xlu0 %v249
    %v251 = vpop.xlane.xlu0 %250
    %v252 = vadd.f32 %v244, %v248
    %v253 = vadd.f32 %v245, %v251
    %vm254 = vcmask 7168
    %255 = vst.msk [vmem:[#allocation4] sm:$0xff] %vm254, %v252
    %256 = vst.msk [vmem:[#allocation4 + $0x8] sm:$0xff] %vm254, %v253
    %v257 = vld [vmem:[#allocation5] sm:$0xff]
    %v258 = vld [vmem:[#allocation5 + $0x8] sm:$0xff]
    %260 = vset.pattern.permute.xlu0 0
    %261 = vperm.xlu0 %260, %v223
    %v262 = vpop.permute.xlu0 %261
    %265 = vset.pattern.permute.xlu0 0
    %266 = vperm.xlu0 %265, %v225
    %v267 = vpop.permute.xlu0 %266
    %v269 = vmul.f32 %v262, %v257
    %v270 = vmul.f32 %v267, %v258
    %v272 = vsel %vm211, %v239, 0
    %274 = vmatpush.msra.mxu0 0.0
    %275 = vmatpush.msra.mxu0 0.0
    %276 = vmatpush.msra.mxu0 0.0
    %277 = vmatpush.msra.mxu0 0.0
    %278 = vmatpush.msra.mxu0 0.0
    %279 = vmatpush.msra.mxu0 0.0
    %280 = vmatpush.msra.mxu0 0.0
    %281 = vmatpush.msra.mxu0 0.0
    %282 = vmatpush.msra.mxu0 0.0
    %283 = vmatpush.msra.mxu0 0.0
    %284 = vmatpush.msra.mxu0 0.0
    %285 = vmatpush.msra.mxu0 0.0
    %286 = vmatpush.msra.mxu0 0.0
    %287 = vmatpush.msra.mxu0 0.0
    %288 = vmatpush.msra.mxu0 0.0
    %289 = vmatpush.msra.mxu0 %v162
    %290 = vmatmul.f32.gmra.mxu0 %v272
    %v291 = vpop.f32.mrf.mxu0
    %v292 = vadd.f32 0.0, %v291
    %293 = vdwg.mxu0
    %v295 = vsel %vm211, %v241, 0
    %297 = vmatpush.msra.mxu0 0.0
    %298 = vmatpush.msra.mxu0 0.0
    %299 = vmatpush.msra.mxu0 0.0
    %300 = vmatpush.msra.mxu0 0.0
    %301 = vmatpush.msra.mxu0 0.0
    %302 = vmatpush.msra.mxu0 0.0
    %303 = vmatpush.msra.mxu0 0.0
    %304 = vmatpush.msra.mxu0 0.0
    %305 = vmatpush.msra.mxu0 0.0
    %306 = vmatpush.msra.mxu0 0.0
    %307 = vmatpush.msra.mxu0 0.0
    %308 = vmatpush.msra.mxu0 0.0
    %309 = vmatpush.msra.mxu0 0.0
    %310 = vmatpush.msra.mxu0 0.0
    %311 = vmatpush.msra.mxu0 0.0
    %312 = vmatpush.msra.mxu0 %v165
    %313 = vmatmul.f32.gmra.mxu0 %v295
    %v314 = vpop.f32.mrf.mxu0
    %v315 = vadd.f32 0.0, %v314
    %316 = vdwg.mxu0
    %v317 = vadd.f32 %v269, %v292
    %v318 = vadd.f32 %v270, %v315
    %319 = vst [vmem:[#allocation5] sm:$0xff] %v317
    %320 = vst [vmem:[#allocation5 + $0x8] sm:$0xff] %v318
    %321 = vst.msk [vmem:[#allocation3] sm:$0xff] %vm254, %v218
    %322 = vst.msk [vmem:[#allocation3 + $0x8] sm:$0xff] %vm254, %v219
    // Predicated region
    $region42: #{head_attention.1} parent=1 // pred_check
      %p323 = pneg %p33
    $region43: #{head_attention.1} parent=1 // pred_check_branch
      %325 = sbr.rel (%p323) target = $region45
    $region44: #{head_attention.1} parent=1 // pred_region
      %v326 = vld [vmem:[#allocation4] sm:$0xff]
      %v327 = vld [vmem:[#allocation4 + $0x8] sm:$0xff]
      %v328 = vrcp.pop %v326
      %v329 = vrcp.pop %v327
      %v330 = vld [vmem:[#allocation5] sm:$0xff]
      %v331 = vld [vmem:[#allocation5 + $0x8] sm:$0xff]
      %333 = vset.pattern.permute.xlu0 0
      %334 = vperm.xlu0 %333, %v328
      %v335 = vpop.permute.xlu0 %334
      %338 = vset.pattern.permute.xlu0 0
      %339 = vperm.xlu0 %338, %v329
      %v340 = vpop.permute.xlu0 %339
      %v342 = vmul.f32 %v330, %v335
      %v343 = vmul.f32 %v331, %v340
      %344 = vst [vmem:[#allocation6] sm:$0xff] %v342
      %345 = vst [vmem:[#allocation6 + $0x8] sm:$0xff] %v343
    $region45: #{head_attention.1} parent=1 // pred_fallthru
      _
    // Predicated region
    $region46: #{head_attention.1} parent=1 // pred_check
      _
    $region47: #{head_attention.1} parent=1 // pred_check_branch
      %347 = sbr.rel (0) target = $region49
    $region48: #{head_attention.1} parent=1 // pred_region
      %349 = vsyncadd [#allocation7], 0
      %s350 = sshll.u32 [#allocation6], 4
      %s351 = int_to_ptr.vmem [resolvable:$true] %s350
      %s352 = sshll.u32 %s9, 4
      %s353 = int_to_ptr.hbm [resolvable:$true] %s352
      %358 = dma.vmem_to_hbm [thread:$0]  %s351, 256, %s353, [#allocation7], 128, 128, 8
    $region49: #{head_attention.1} parent=1 // pred_fallthru
      _
    // Predicated region
    $region50: #{head_attention.1} parent=1 // pred_check
      _
    $region51: #{head_attention.1} parent=1 // pred_check_branch
      %360 = sbr.rel (0) target = $region53
    $region52: #{head_attention.1} parent=1 // pred_region
      %362 = dma.done [#allocation7], 256
    $region53: #{head_attention.1} parent=1 // pred_fallthru
      _
    %363 = vsyncpa [#allocation7], 1

</llo_original>
